<compile_context>
chip_gen: v7x
topology: tpu7x:2x2x1
jax: 0.10.0
libtpu: 0.0.40
codegen_flags: <defaults>
</compile_context>

<pallas_src>
from functools import partial

import jax
import jax.numpy as jnp
from jax.experimental import pallas as pl
from jax.experimental.pallas import tpu as pltpu


def _pos_embed_kernel(col_ref, row_ref, out_ref):
    # col_ref: (D, 1, W)   col_ref[c, 0, w] == column_weight[w, c]
    # row_ref: (D, H, 1)   row_ref[c, h, 0] == row_weight[h, c]
    # out_ref: (1, 2D, H, W) block for the current batch element.
    D, _, W = col_ref.shape
    _, H, _ = row_ref.shape
    # Channels [0, D): x/column embedding, broadcast down the H (sublane) axis.
    out_ref[0, :D, :, :] = jnp.broadcast_to(col_ref[...], (D, H, W))
    # Channels [D, 2D): y/row embedding, broadcast along the W (lane) axis.
    out_ref[0, D:, :, :] = jnp.broadcast_to(row_ref[...], (D, H, W))


@partial(jax.jit, static_argnames=("batch", "height", "width"))
def learned_position_embedding(column_weight, row_weight, *, batch, height, width):
    """Returns (B, 2*D, H, W) learned 2D position embeddings (DETR)."""
    n_pos, D = column_weight.shape
    assert height <= row_weight.shape[0] and width <= n_pos
    dtype = column_weight.dtype

    # Embedding(arange(n)) == first n rows of the table (static slice). The tiny
    # (n, D) -> (D, n) transposes are layout plumbing on KB-sized arrays so the
    # kernel can write the channel-first output without an in-kernel transpose.
    col3 = jnp.transpose(column_weight[:width])[:, None, :]    # (D, 1, W)
    row3 = jnp.transpose(row_weight[:height])[:, :, None]      # (D, H, 1)

    return pl.pallas_call(
        _pos_embed_kernel,
        out_shape=jax.ShapeDtypeStruct((batch, 2 * D, height, width), dtype),
        grid_spec=pltpu.PrefetchScalarGridSpec(
            num_scalar_prefetch=0,
            grid=(batch,),
            in_specs=[
                pl.BlockSpec((D, 1, width), lambda b: (0, 0, 0)),
                pl.BlockSpec((D, height, 1), lambda b: (0, 0, 0)),
            ],
            out_specs=pl.BlockSpec((1, 2 * D, height, width),
                                   lambda b: (b, 0, 0, 0)),
        ),
        compiler_params=pltpu.CompilerParams(
            dimension_semantics=("parallel",)),   # v7x: split batch across TCs
    )(col3, row3)


class DetrLearnedPositionEmbeddingPallas:
    """JAX/Pallas port of DETR's learned 2D position embedding module."""

    def __init__(self, embedding_dim: int = 256, num_positions: int = 50,
                 *, key=None, dtype=jnp.float32):
        if key is None:
            key = jax.random.PRNGKey(0)
        k_row, k_col = jax.random.split(key)
        # torch nn.Embedding default init: N(0, 1)
        self.row_embedding = jax.random.normal(
            k_row, (num_positions, embedding_dim), dtype)
        self.column_embedding = jax.random.normal(
            k_col, (num_positions, embedding_dim), dtype)

    def __call__(self, pixel_values, pixel_mask=None):
        # pixel_mask is accepted but unused, exactly like the torch module.
        batch = pixel_values.shape[0]
        height, width = pixel_values.shape[-2:]
        return learned_position_embedding(
            self.column_embedding, self.row_embedding,
            batch=batch, height=height, width=width)


def _reference(column_weight, row_weight, batch, height, width):
    """Pure-JAX replica of the torch forward for correctness checking."""
    x_emb = column_weight[:width]                         # (W, D)
    y_emb = row_weight[:height]                           # (H, D)
    pos = jnp.concatenate(
        [jnp.broadcast_to(x_emb[None, :, :], (height, width, x_emb.shape[-1])),
         jnp.broadcast_to(y_emb[:, None, :], (height, width, y_emb.shape[-1]))],
        axis=-1)                                          # (H, W, 2D)
    pos = jnp.transpose(pos, (2, 0, 1))                   # (2D, H, W)
    return jnp.broadcast_to(pos[None], (batch,) + pos.shape)


if __name__ == "__main__":
    B, C, H, W = 2, 4, 16, 16
    EMBED_DIM = 64            # output channels = 2 * EMBED_DIM = 128

    key = jax.random.PRNGKey(0)
    k_mod, k_pix = jax.random.split(key)
    module = DetrLearnedPositionEmbeddingPallas(embedding_dim=EMBED_DIM, key=k_mod)
    pixel_values = jax.random.normal(k_pix, (B, C, H, W), jnp.float32)

    out = module(pixel_values)
    out = jax.block_until_ready(out)
    assert out.shape == (B, 2 * EMBED_DIM, H, W), out.shape

    ref = _reference(module.column_embedding, module.row_embedding, B, H, W)
    assert bool(jnp.allclose(out, ref)), float(jnp.max(jnp.abs(out - ref)))

    print("KERNEL_OK")
</pallas_src>

<mosaic_0001>
module attributes {stable_mosaic.version = 11 : i64} {
  func.func @_pos_embed_kernel(%arg0: i32, %arg1: memref<64x1x16xf32, #tpu.memory_space<vmem>>, %arg2: memref<64x16x1xf32, #tpu.memory_space<vmem>>, %arg3: memref<1x128x16x16xf32, #tpu.memory_space<vmem>>) attributes {dimension_semantics = [#tpu.dimension_semantics<parallel>], iteration_bounds = array<i64: 2>, scalar_prefetch = 0 : i64, scratch_operands = 0 : i64, tpu.core_type = #tpu.core_type<tc>, window_params = [{pipeline_mode = #tpu.pipeline_mode<synchronous>, transform_indices = @transform_0, window_bounds = array<i64: 64, 1, 16>}, {pipeline_mode = #tpu.pipeline_mode<synchronous>, transform_indices = @transform_1, window_bounds = array<i64: 64, 16, 1>}, {transform_indices = @transform_2, window_bounds = array<i64: 1, 128, 16, 16>}]} {
    %c0 = arith.constant 0 : index
    %c0_0 = arith.constant 0 : index
    %c0_1 = arith.constant 0 : index
    %0 = vector.load %arg1[%c0, %c0_0, %c0_1] : memref<64x1x16xf32, #tpu.memory_space<vmem>>, vector<64x1x16xf32>
    %1 = vector.shape_cast %0 : vector<64x1x16xf32> to vector<64x1x16xf32>
    %2 = vector.broadcast %1 : vector<64x1x16xf32> to vector<64x16x16xf32>
    %c0_2 = arith.constant 0 : index
    %c0_3 = arith.constant 0 : index
    %c0_4 = arith.constant 0 : index
    %c0_5 = arith.constant 0 : index
    %3 = vector.load %arg3[%c0_2, %c0_3, %c0_4, %c0_5] : memref<1x128x16x16xf32, #tpu.memory_space<vmem>>, vector<1x64x16x16xf32>
    %4 = vector.shape_cast %3 : vector<1x64x16x16xf32> to vector<64x16x16xf32>
    %5 = vector.shape_cast %2 : vector<64x16x16xf32> to vector<1x64x16x16xf32>
    tpu.vector_store %arg3[%c0_2, %c0_3, %c0_4, %c0_5], %5 {strides = array<i32>} : memref<1x128x16x16xf32, #tpu.memory_space<vmem>>, vector<1x64x16x16xf32>,
    %c0_6 = arith.constant 0 : index
    %c0_7 = arith.constant 0 : index
    %c0_8 = arith.constant 0 : index
    %6 = vector.load %arg2[%c0_6, %c0_7, %c0_8] : memref<64x16x1xf32, #tpu.memory_space<vmem>>, vector<64x16x1xf32>
    %7 = vector.shape_cast %6 : vector<64x16x1xf32> to vector<64x16x1xf32>
    %8 = vector.broadcast %7 : vector<64x16x1xf32> to vector<64x16x16xf32>
    %c0_9 = arith.constant 0 : index
    %c64 = arith.constant 64 : index
    %c0_10 = arith.constant 0 : index
    %c0_11 = arith.constant 0 : index
    %9 = vector.load %arg3[%c0_9, %c64, %c0_10, %c0_11] : memref<1x128x16x16xf32, #tpu.memory_space<vmem>>, vector<1x64x16x16xf32>
    %10 = vector.shape_cast %9 : vector<1x64x16x16xf32> to vector<64x16x16xf32>
    %11 = vector.shape_cast %8 : vector<64x16x16xf32> to vector<1x64x16x16xf32>
    tpu.vector_store %arg3[%c0_9, %c64, %c0_10, %c0_11], %11 {strides = array<i32>} : memref<1x128x16x16xf32, #tpu.memory_space<vmem>>, vector<1x64x16x16xf32>,
    return
  }
  func.func @transform_0(%arg0: i32) -> (i32, i32, i32) {
    %c0_i32 = arith.constant 0 : i32
    %c0_i32_0 = arith.constant 0 : i32
    %c0_i32_1 = arith.constant 0 : i32
    %c0_i32_2 = arith.constant 0 : i32
    return %c0_i32, %c0_i32_0, %c0_i32_1 : i32, i32, i32
  }
  func.func @transform_1(%arg0: i32) -> (i32, i32, i32) {
    %c0_i32 = arith.constant 0 : i32
    %c0_i32_0 = arith.constant 0 : i32
    %c0_i32_1 = arith.constant 0 : i32
    %c0_i32_2 = arith.constant 0 : i32
    return %c0_i32, %c0_i32_0, %c0_i32_1 : i32, i32, i32
  }
  func.func @transform_2(%arg0: i32) -> (i32, i32, i32, i32) {
    %c0_i32 = arith.constant 0 : i32
    %c0_i32_0 = arith.constant 0 : i32
    %c0_i32_1 = arith.constant 0 : i32
    %c0_i32_2 = arith.constant 0 : i32
    return %arg0, %c0_i32, %c0_i32_0, %c0_i32_1 : i32, i32, i32, i32
  }
}

</mosaic_0001>

<llo_original>
// kernel: learned_position_embedding.1
$region0: #{learned_position_embedding.1}
  #allocation0 [shape = 'u32[]', space=smem, size = 0x4, offset = 0x4, fixed_abs, tag = 'smem constant byte address 0x4 - core index']
  #allocation1 [shape = 'u32[144,128]{1,0:T(1,128)}', space=vmem, size = 0x12000, scoped, tag = 'internal scratch']
  %s0 = inlined_call_operand.vmem [shape: f32[64,1,16], index: 0, kind: input, shape index: {}]
  %s1 = inlined_call_operand.vmem [shape: f32[64,16,1], index: 1, kind: input, shape index: {}]
  %s2 = inlined_call_operand.vmem [shape: f32[2,128,16,16], index: 2, kind: output, shape index: {}]
  %s3 = sld [smem:[#allocation0]]
  $region41: #{learned_position_embedding.1} parent=0
    _
  %s5 = ssub.s32 1, %s3
  %s6 = scalar_select 0, %s5, %s3
  loop: start=0, step=1, limit=4
  $region2: #{learned_position_embedding.1} parent=0 // loop_pre_header
    _
  $region3: #{learned_position_embedding.1} parent=0 // loop_header
    %s8 = sphi 0, %s12
    %p9 = scmp.ge.s32.totalorder %s8, 4
    %s16 = sphi 0, %s16
    %s18 = sphi 0, %s16
    %s19 = sphi 0, %s18
    %s33 = sphi 0, %s19
    %s37 = sphi 0, %s37
    %s39 = sphi 0, %s37
    %s40 = sphi 0, %s39
    %s54 = sphi 0, %s40
    %s60 = sphi 0, %s62
    %s63 = sphi 0, %s60
    %s64 = sphi 0, %s63
    %s80 = sphi 0, %s64
  $region4: #{learned_position_embedding.1} parent=0 // loop_header_branch
    %11 = sbr.rel (%p9) target = $region8
  $region5: #{learned_position_embedding.1} parent=0 // loop_body
    %s13 = ssub.s32 %s8, 1
    %s14 = ssub.s32 %s8, 2
    %s15 = sadd.s32 %s8, 1
    %s17 = sadd.s32 %s16, 1
    %p20 = scmp.eq.s32.totalorder %s8, 1
    %p21 = scmp.ne.s32.totalorder %s16, %s18
    %p22 = scmp.eq.s32.totalorder %s8, 0
    %p23 = por %p21, %p22
    %p24 = scmp.ne.s32.totalorder %s16, %s18
    %p25 = scmp.eq.s32.totalorder %s13, 1
    %p26 = por %p24, %p25
    %p27 = scmp.ne.s32.totalorder %s18, %s19
    %p28 = scmp.eq.s32.totalorder %s13, 0
    %p29 = por %p27, %p28
    %p30 = scmp.ne.s32.totalorder %s18, %s19
    %p31 = scmp.eq.s32.totalorder %s14, 1
    %p32 = por %p30, %p31
    %p34 = scmp.ne.s32.totalorder %s19, %s33
    %p35 = scmp.eq.s32.totalorder %s14, 0
    %p36 = por %p34, %p35
    %s38 = sadd.s32 %s37, 1
    %p41 = scmp.eq.s32.totalorder %s8, 1
    %p42 = scmp.ne.s32.totalorder %s37, %s39
    %p43 = scmp.eq.s32.totalorder %s8, 0
    %p44 = por %p42, %p43
    %p45 = scmp.ne.s32.totalorder %s37, %s39
    %p46 = scmp.eq.s32.totalorder %s13, 1
    %p47 = por %p45, %p46
    %p48 = scmp.ne.s32.totalorder %s39, %s40
    %p49 = scmp.eq.s32.totalorder %s13, 0
    %p50 = por %p48, %p49
    %p51 = scmp.ne.s32.totalorder %s39, %s40
    %p52 = scmp.eq.s32.totalorder %s14, 1
    %p53 = por %p51, %p52
    %p55 = scmp.ne.s32.totalorder %s40, %s54
    %p56 = scmp.eq.s32.totalorder %s14, 0
    %p57 = por %p55, %p56
    %s58 = ssub.s32 %s8, %s15
    %p59 = scmp.eq.s32.totalorder %s58, 0
    %s61 = sadd.s32 %s60, 1
    %s62 = scalar_select %p59, %s60, %s61
    %p65 = pneg %p59
    %p66 = scmp.eq.s32.totalorder %s8, 1
    %p67 = por %p65, %p66
    %p68 = scmp.ne.s32.totalorder %s60, %s63
    %p69 = scmp.eq.s32.totalorder %s8, 0
    %p70 = por %p68, %p69
    %p71 = scmp.ne.s32.totalorder %s60, %s63
    %p72 = scmp.eq.s32.totalorder %s13, 1
    %p73 = por %p71, %p72
    %p74 = scmp.ne.s32.totalorder %s63, %s64
    %p75 = scmp.eq.s32.totalorder %s13, 0
    %p76 = por %p74, %p75
    %p77 = scmp.ne.s32.totalorder %s63, %s64
    %p78 = scmp.eq.s32.totalorder %s14, 1
    %p79 = por %p77, %p78
    %p81 = scmp.ne.s32.totalorder %s64, %s80
    %p82 = scmp.eq.s32.totalorder %s14, 0
    %p83 = por %p81, %p82
    %p84 = scmp.le.s32.totalorder 1, %s8
    %p85 = scmp.lt.s32.totalorder %s8, 3
    %p86 = pnand %p84, %p85
    %p87 = pneg %p86
    // Predicated region
    $region9: #{learned_position_embedding.1} parent=5 // pred_check
      _
    $region10: #{learned_position_embedding.1} parent=5 // pred_check_branch
      %89 = sbr.rel (%p86) target = $region12
    $region11: #{learned_position_embedding.1} parent=5 // pred_region
      %s90 = ssub.s32 %s8, 1
      // Predicated region
      $region13: #{learned_position_embedding.1} parent=11 // pred_check
        %p91 = pneg %p29
      $region14: #{learned_position_embedding.1} parent=11 // pred_check_branch
        %93 = sbr.rel (%p91) target = $region16
      $region15: #{learned_position_embedding.1} parent=11 // pred_region
        _
      $region16: #{learned_position_embedding.1} parent=11 // pred_fallthru
        _
      // Predicated region
      $region17: #{learned_position_embedding.1} parent=11 // pred_check
        %p94 = pneg %p50
      $region18: #{learned_position_embedding.1} parent=11 // pred_check_branch
        %96 = sbr.rel (%p94) target = $region20
      $region19: #{learned_position_embedding.1} parent=11 // pred_region
        _
      $region20: #{learned_position_embedding.1} parent=11 // pred_fallthru
        _
    $region12: #{learned_position_embedding.1} parent=5 // pred_fallthru
      _
    %p97 = scmp.lt.s32.totalorder %s8, 2
    // Predicated region
    $region21: #{learned_position_embedding.1} parent=5 // pred_check
      %p98 = pneg %p97
    $region22: #{learned_position_embedding.1} parent=5 // pred_check_branch
      %100 = sbr.rel (%p98) target = $region24
    $region23: #{learned_position_embedding.1} parent=5 // pred_region
      _
    $region24: #{learned_position_embedding.1} parent=5 // pred_fallthru
      _
    %p101 = scmp.le.s32.totalorder 1, %s8
    %p102 = scmp.lt.s32.totalorder %s8, 3
    %p103 = pnand %p101, %p102
    %p104 = pneg %p103
    // Predicated region
    $region25: #{learned_position_embedding.1} parent=5 // pred_check
      _
    $region26: #{learned_position_embedding.1} parent=5 // pred_check_branch
      %106 = sbr.rel (%p103) target = $region28
    $region27: #{learned_position_embedding.1} parent=5 // pred_region
      %s107 = ssub.s32 %s8, 1
      %p108 = pneg %p29
      %p109 = pneg %p26
      %p110 = pneg %p50
      %p111 = pneg %p47
      %p112 = pneg %p76
      %p113 = pneg %p73
      %p114 = scmp.lt.s32.totalorder %s13, 1
      %s115 = scalar_select %p114, %s13, 1
      %s116 = smul.addr %s115, 256
      %s117 = smul.addr %s116, 8
      %s118 = scalar_lea.vmem %s2, %s117
      %p119 = scmp.lt.s32.totalorder %s13, 1
      %s120 = scalar_select %p119, %s13, 1
      %s121 = smul.addr %s120, 256
      %s122 = smul.addr %s121, 8
      %s123 = scalar_lea.vmem %s2, %s122
      %v124 = vld [vmem:[%s0] sm:$0x1]
      %v125 = vld [vmem:[%s0 + $0x1] sm:$0x1]
      %v126 = vld [vmem:[%s0 + $0x2] sm:$0x1]
      %v127 = vld [vmem:[%s0 + $0x3] sm:$0x1]
      %v128 = vld [vmem:[%s0 + $0x4] sm:$0x1]
      %v129 = vld [vmem:[%s0 + $0x5] sm:$0x1]
      %v130 = vld [vmem:[%s0 + $0x6] sm:$0x1]
      %v131 = vld [vmem:[%s0 + $0x7] sm:$0x1]
      %v132 = vld [vmem:[%s0 + $0x8] sm:$0x1]
      %v133 = vld [vmem:[%s0 + $0x9] sm:$0x1]
      %v134 = vld [vmem:[%s0 + $0xa] sm:$0x1]
      %v135 = vld [vmem:[%s0 + $0xb] sm:$0x1]
      %v136 = vld [vmem:[%s0 + $0xc] sm:$0x1]
      %v137 = vld [vmem:[%s0 + $0xd] sm:$0x1]
      %v138 = vld [vmem:[%s0 + $0xe] sm:$0x1]
      %v139 = vld [vmem:[%s0 + $0xf] sm:$0x1]
      %v140 = vld [vmem:[%s0 + $0x10] sm:$0x1]
      %v141 = vld [vmem:[%s0 + $0x11] sm:$0x1]
      %v142 = vld [vmem:[%s0 + $0x12] sm:$0x1]
      %v143 = vld [vmem:[%s0 + $0x13] sm:$0x1]
      %v144 = vld [vmem:[%s0 + $0x14] sm:$0x1]
      %v145 = vld [vmem:[%s0 + $0x15] sm:$0x1]
      %v146 = vld [vmem:[%s0 + $0x16] sm:$0x1]
      %v147 = vld [vmem:[%s0 + $0x17] sm:$0x1]
      %v148 = vld [vmem:[%s0 + $0x18] sm:$0x1]
      %v149 = vld [vmem:[%s0 + $0x19] sm:$0x1]
      %v150 = vld [vmem:[%s0 + $0x1a] sm:$0x1]
      %v151 = vld [vmem:[%s0 + $0x1b] sm:$0x1]
      %v152 = vld [vmem:[%s0 + $0x1c] sm:$0x1]
      %v153 = vld [vmem:[%s0 + $0x1d] sm:$0x1]
      %v154 = vld [vmem:[%s0 + $0x1e] sm:$0x1]
      %v155 = vld [vmem:[%s0 + $0x1f] sm:$0x1]
      %v156 = vld [vmem:[%s0 + $0x20] sm:$0x1]
      %v157 = vld [vmem:[%s0 + $0x21] sm:$0x1]
      %v158 = vld [vmem:[%s0 + $0x22] sm:$0x1]
      %v159 = vld [vmem:[%s0 + $0x23] sm:$0x1]
      %v160 = vld [vmem:[%s0 + $0x24] sm:$0x1]
      %v161 = vld [vmem:[%s0 + $0x25] sm:$0x1]
      %v162 = vld [vmem:[%s0 + $0x26] sm:$0x1]
      %v163 = vld [vmem:[%s0 + $0x27] sm:$0x1]
      %v164 = vld [vmem:[%s0 + $0x28] sm:$0x1]
      %v165 = vld [vmem:[%s0 + $0x29] sm:$0x1]
      %v166 = vld [vmem:[%s0 + $0x2a] sm:$0x1]
      %v167 = vld [vmem:[%s0 + $0x2b] sm:$0x1]
      %v168 = vld [vmem:[%s0 + $0x2c] sm:$0x1]
      %v169 = vld [vmem:[%s0 + $0x2d] sm:$0x1]
      %v170 = vld [vmem:[%s0 + $0x2e] sm:$0x1]
      %v171 = vld [vmem:[%s0 + $0x2f] sm:$0x1]
      %v172 = vld [vmem:[%s0 + $0x30] sm:$0x1]
      %v173 = vld [vmem:[%s0 + $0x31] sm:$0x1]
      %v174 = vld [vmem:[%s0 + $0x32] sm:$0x1]
      %v175 = vld [vmem:[%s0 + $0x33] sm:$0x1]
      %v176 = vld [vmem:[%s0 + $0x34] sm:$0x1]
      %v177 = vld [vmem:[%s0 + $0x35] sm:$0x1]
      %v178 = vld [vmem:[%s0 + $0x36] sm:$0x1]
      %v179 = vld [vmem:[%s0 + $0x37] sm:$0x1]
      %v180 = vld [vmem:[%s0 + $0x38] sm:$0x1]
      %v181 = vld [vmem:[%s0 + $0x39] sm:$0x1]
      %v182 = vld [vmem:[%s0 + $0x3a] sm:$0x1]
      %v183 = vld [vmem:[%s0 + $0x3b] sm:$0x1]
      %v184 = vld [vmem:[%s0 + $0x3c] sm:$0x1]
      %v185 = vld [vmem:[%s0 + $0x3d] sm:$0x1]
      %v186 = vld [vmem:[%s0 + $0x3e] sm:$0x1]
      %v187 = vld [vmem:[%s0 + $0x3f] sm:$0x1]
      %v252 = vlaneseq
      %v253 = vshrl.u32 %v252, 7
      %v254 = vsub.s32 0, %v253
      %v255 = vrot.slane %v124, %v254
      %v256 = vlaneseq
      %v257 = vshrl.u32 %v256, 7
      %v258 = vsub.s32 0, %v257
      %v259 = vrot.slane %v125, %v258
      %v260 = vlaneseq
      %v261 = vshrl.u32 %v260, 7
      %v262 = vsub.s32 0, %v261
      %v263 = vrot.slane %v126, %v262
      %v264 = vlaneseq
      %v265 = vshrl.u32 %v264, 7
      %v266 = vsub.s32 0, %v265
      %v267 = vrot.slane %v127, %v266
      %v268 = vlaneseq
      %v269 = vshrl.u32 %v268, 7
      %v270 = vsub.s32 0, %v269
      %v271 = vrot.slane %v128, %v270
      %v272 = vlaneseq
      %v273 = vshrl.u32 %v272, 7
      %v274 = vsub.s32 0, %v273
      %v275 = vrot.slane %v129, %v274
      %v276 = vlaneseq
      %v277 = vshrl.u32 %v276, 7
      %v278 = vsub.s32 0, %v277
      %v279 = vrot.slane %v130, %v278
      %v280 = vlaneseq
      %v281 = vshrl.u32 %v280, 7
      %v282 = vsub.s32 0, %v281
      %v283 = vrot.slane %v131, %v282
      %v284 = vlaneseq
      %v285 = vshrl.u32 %v284, 7
      %v286 = vsub.s32 0, %v285
      %v287 = vrot.slane %v132, %v286
      %v288 = vlaneseq
      %v289 = vshrl.u32 %v288, 7
      %v290 = vsub.s32 0, %v289
      %v291 = vrot.slane %v133, %v290
      %v292 = vlaneseq
      %v293 = vshrl.u32 %v292, 7
      %v294 = vsub.s32 0, %v293
      %v295 = vrot.slane %v134, %v294
      %v296 = vlaneseq
      %v297 = vshrl.u32 %v296, 7
      %v298 = vsub.s32 0, %v297
      %v299 = vrot.slane %v135, %v298
      %v300 = vlaneseq
      %v301 = vshrl.u32 %v300, 7
      %v302 = vsub.s32 0, %v301
      %v303 = vrot.slane %v136, %v302
      %v304 = vlaneseq
      %v305 = vshrl.u32 %v304, 7
      %v306 = vsub.s32 0, %v305
      %v307 = vrot.slane %v137, %v306
      %v308 = vlaneseq
      %v309 = vshrl.u32 %v308, 7
      %v310 = vsub.s32 0, %v309
      %v311 = vrot.slane %v138, %v310
      %v312 = vlaneseq
      %v313 = vshrl.u32 %v312, 7
      %v314 = vsub.s32 0, %v313
      %v315 = vrot.slane %v139, %v314
      %v316 = vlaneseq
      %v317 = vshrl.u32 %v316, 7
      %v318 = vsub.s32 0, %v317
      %v319 = vrot.slane %v140, %v318
      %v320 = vlaneseq
      %v321 = vshrl.u32 %v320, 7
      %v322 = vsub.s32 0, %v321
      %v323 = vrot.slane %v141, %v322
      %v324 = vlaneseq
      %v325 = vshrl.u32 %v324, 7
      %v326 = vsub.s32 0, %v325
      %v327 = vrot.slane %v142, %v326
      %v328 = vlaneseq
      %v329 = vshrl.u32 %v328, 7
      %v330 = vsub.s32 0, %v329
      %v331 = vrot.slane %v143, %v330
      %v332 = vlaneseq
      %v333 = vshrl.u32 %v332, 7
      %v334 = vsub.s32 0, %v333
      %v335 = vrot.slane %v144, %v334
      %v336 = vlaneseq
      %v337 = vshrl.u32 %v336, 7
      %v338 = vsub.s32 0, %v337
      %v339 = vrot.slane %v145, %v338
      %v340 = vlaneseq
      %v341 = vshrl.u32 %v340, 7
      %v342 = vsub.s32 0, %v341
      %v343 = vrot.slane %v146, %v342
      %v344 = vlaneseq
      %v345 = vshrl.u32 %v344, 7
      %v346 = vsub.s32 0, %v345
      %v347 = vrot.slane %v147, %v346
      %v348 = vlaneseq
      %v349 = vshrl.u32 %v348, 7
      %v350 = vsub.s32 0, %v349
      %v351 = vrot.slane %v148, %v350
      %v352 = vlaneseq
      %v353 = vshrl.u32 %v352, 7
      %v354 = vsub.s32 0, %v353
      %v355 = vrot.slane %v149, %v354
      %v356 = vlaneseq
      %v357 = vshrl.u32 %v356, 7
      %v358 = vsub.s32 0, %v357
      %v359 = vrot.slane %v150, %v358
      %v360 = vlaneseq
      %v361 = vshrl.u32 %v360, 7
      %v362 = vsub.s32 0, %v361
      %v363 = vrot.slane %v151, %v362
      %v364 = vlaneseq
      %v365 = vshrl.u32 %v364, 7
      %v366 = vsub.s32 0, %v365
      %v367 = vrot.slane %v152, %v366
      %v368 = vlaneseq
      %v369 = vshrl.u32 %v368, 7
      %v370 = vsub.s32 0, %v369
      %v371 = vrot.slane %v153, %v370
      %v372 = vlaneseq
      %v373 = vshrl.u32 %v372, 7
      %v374 = vsub.s32 0, %v373
      %v375 = vrot.slane %v154, %v374
      %v376 = vlaneseq
      %v377 = vshrl.u32 %v376, 7
      %v378 = vsub.s32 0, %v377
      %v379 = vrot.slane %v155, %v378
      %v380 = vlaneseq
      %v381 = vshrl.u32 %v380, 7
      %v382 = vsub.s32 0, %v381
      %v383 = vrot.slane %v156, %v382
      %v384 = vlaneseq
      %v385 = vshrl.u32 %v384, 7
      %v386 = vsub.s32 0, %v385
      %v387 = vrot.slane %v157, %v386
      %v388 = vlaneseq
      %v389 = vshrl.u32 %v388, 7
      %v390 = vsub.s32 0, %v389
      %v391 = vrot.slane %v158, %v390
      %v392 = vlaneseq
      %v393 = vshrl.u32 %v392, 7
      %v394 = vsub.s32 0, %v393
      %v395 = vrot.slane %v159, %v394
      %v396 = vlaneseq
      %v397 = vshrl.u32 %v396, 7
      %v398 = vsub.s32 0, %v397
      %v399 = vrot.slane %v160, %v398
      %v400 = vlaneseq
      %v401 = vshrl.u32 %v400, 7
      %v402 = vsub.s32 0, %v401
      %v403 = vrot.slane %v161, %v402
      %v404 = vlaneseq
      %v405 = vshrl.u32 %v404, 7
      %v406 = vsub.s32 0, %v405
      %v407 = vrot.slane %v162, %v406
      %v408 = vlaneseq
      %v409 = vshrl.u32 %v408, 7
      %v410 = vsub.s32 0, %v409
      %v411 = vrot.slane %v163, %v410
      %v412 = vlaneseq
      %v413 = vshrl.u32 %v412, 7
      %v414 = vsub.s32 0, %v413
      %v415 = vrot.slane %v164, %v414
      %v416 = vlaneseq
      %v417 = vshrl.u32 %v416, 7
      %v418 = vsub.s32 0, %v417
      %v419 = vrot.slane %v165, %v418
      %v420 = vlaneseq
      %v421 = vshrl.u32 %v420, 7
      %v422 = vsub.s32 0, %v421
      %v423 = vrot.slane %v166, %v422
      %v424 = vlaneseq
      %v425 = vshrl.u32 %v424, 7
      %v426 = vsub.s32 0, %v425
      %v427 = vrot.slane %v167, %v426
      %v428 = vlaneseq
      %v429 = vshrl.u32 %v428, 7
      %v430 = vsub.s32 0, %v429
      %v431 = vrot.slane %v168, %v430
      %v432 = vlaneseq
      %v433 = vshrl.u32 %v432, 7
      %v434 = vsub.s32 0, %v433
      %v435 = vrot.slane %v169, %v434
      %v436 = vlaneseq
      %v437 = vshrl.u32 %v436, 7
      %v438 = vsub.s32 0, %v437
      %v439 = vrot.slane %v170, %v438
      %v440 = vlaneseq
      %v441 = vshrl.u32 %v440, 7
      %v442 = vsub.s32 0, %v441
      %v443 = vrot.slane %v171, %v442
      %v444 = vlaneseq
      %v445 = vshrl.u32 %v444, 7
      %v446 = vsub.s32 0, %v445
      %v447 = vrot.slane %v172, %v446
      %v448 = vlaneseq
      %v449 = vshrl.u32 %v448, 7
      %v450 = vsub.s32 0, %v449
      %v451 = vrot.slane %v173, %v450
      %v452 = vlaneseq
      %v453 = vshrl.u32 %v452, 7
      %v454 = vsub.s32 0, %v453
      %v455 = vrot.slane %v174, %v454
      %v456 = vlaneseq
      %v457 = vshrl.u32 %v456, 7
      %v458 = vsub.s32 0, %v457
      %v459 = vrot.slane %v175, %v458
      %v460 = vlaneseq
      %v461 = vshrl.u32 %v460, 7
      %v462 = vsub.s32 0, %v461
      %v463 = vrot.slane %v176, %v462
      %v464 = vlaneseq
      %v465 = vshrl.u32 %v464, 7
      %v466 = vsub.s32 0, %v465
      %v467 = vrot.slane %v177, %v466
      %v468 = vlaneseq
      %v469 = vshrl.u32 %v468, 7
      %v470 = vsub.s32 0, %v469
      %v471 = vrot.slane %v178, %v470
      %v472 = vlaneseq
      %v473 = vshrl.u32 %v472, 7
      %v474 = vsub.s32 0, %v473
      %v475 = vrot.slane %v179, %v474
      %v476 = vlaneseq
      %v477 = vshrl.u32 %v476, 7
      %v478 = vsub.s32 0, %v477
      %v479 = vrot.slane %v180, %v478
      %v480 = vlaneseq
      %v481 = vshrl.u32 %v480, 7
      %v482 = vsub.s32 0, %v481
      %v483 = vrot.slane %v181, %v482
      %v484 = vlaneseq
      %v485 = vshrl.u32 %v484, 7
      %v486 = vsub.s32 0, %v485
      %v487 = vrot.slane %v182, %v486
      %v488 = vlaneseq
      %v489 = vshrl.u32 %v488, 7
      %v490 = vsub.s32 0, %v489
      %v491 = vrot.slane %v183, %v490
      %v492 = vlaneseq
      %v493 = vshrl.u32 %v492, 7
      %v494 = vsub.s32 0, %v493
      %v495 = vrot.slane %v184, %v494
      %v496 = vlaneseq
      %v497 = vshrl.u32 %v496, 7
      %v498 = vsub.s32 0, %v497
      %v499 = vrot.slane %v185, %v498
      %v500 = vlaneseq
      %v501 = vshrl.u32 %v500, 7
      %v502 = vsub.s32 0, %v501
      %v503 = vrot.slane %v186, %v502
      %v504 = vlaneseq
      %v505 = vshrl.u32 %v504, 7
      %v506 = vsub.s32 0, %v505
      %v507 = vrot.slane %v187, %v506
      %vm572 = vcmask 130048
      %573 = vst.msk [vmem:[%s123] sm:$0xff] %vm572, %v255
      %574 = vst.msk [vmem:[%s123 + $0x8] sm:$0xff] %vm572, %v255
      %575 = vst.msk [vmem:[%s123 + $0x10] sm:$0xff] %vm572, %v259
      %576 = vst.msk [vmem:[%s123 + $0x18] sm:$0xff] %vm572, %v259
      %577 = vst.msk [vmem:[%s123 + $0x20] sm:$0xff] %vm572, %v263
      %578 = vst.msk [vmem:[%s123 + $0x28] sm:$0xff] %vm572, %v263
      %579 = vst.msk [vmem:[%s123 + $0x30] sm:$0xff] %vm572, %v267
      %580 = vst.msk [vmem:[%s123 + $0x38] sm:$0xff] %vm572, %v267
      %581 = vst.msk [vmem:[%s123 + $0x40] sm:$0xff] %vm572, %v271
      %582 = vst.msk [vmem:[%s123 + $0x48] sm:$0xff] %vm572, %v271
      %583 = vst.msk [vmem:[%s123 + $0x50] sm:$0xff] %vm572, %v275
      %584 = vst.msk [vmem:[%s123 + $0x58] sm:$0xff] %vm572, %v275
      %585 = vst.msk [vmem:[%s123 + $0x60] sm:$0xff] %vm572, %v279
      %586 = vst.msk [vmem:[%s123 + $0x68] sm:$0xff] %vm572, %v279
      %587 = vst.msk [vmem:[%s123 + $0x70] sm:$0xff] %vm572, %v283
      %588 = vst.msk [vmem:[%s123 + $0x78] sm:$0xff] %vm572, %v283
      %589 = vst.msk [vmem:[%s123 + $0x80] sm:$0xff] %vm572, %v287
      %590 = vst.msk [vmem:[%s123 + $0x88] sm:$0xff] %vm572, %v287
      %591 = vst.msk [vmem:[%s123 + $0x90] sm:$0xff] %vm572, %v291
      %592 = vst.msk [vmem:[%s123 + $0x98] sm:$0xff] %vm572, %v291
      %593 = vst.msk [vmem:[%s123 + $0xa0] sm:$0xff] %vm572, %v295
      %594 = vst.msk [vmem:[%s123 + $0xa8] sm:$0xff] %vm572, %v295
      %595 = vst.msk [vmem:[%s123 + $0xb0] sm:$0xff] %vm572, %v299
      %596 = vst.msk [vmem:[%s123 + $0xb8] sm:$0xff] %vm572, %v299
      %597 = vst.msk [vmem:[%s123 + $0xc0] sm:$0xff] %vm572, %v303
      %598 = vst.msk [vmem:[%s123 + $0xc8] sm:$0xff] %vm572, %v303
      %599 = vst.msk [vmem:[%s123 + $0xd0] sm:$0xff] %vm572, %v307
      %600 = vst.msk [vmem:[%s123 + $0xd8] sm:$0xff] %vm572, %v307
      %601 = vst.msk [vmem:[%s123 + $0xe0] sm:$0xff] %vm572, %v311
      %602 = vst.msk [vmem:[%s123 + $0xe8] sm:$0xff] %vm572, %v311
      %603 = vst.msk [vmem:[%s123 + $0xf0] sm:$0xff] %vm572, %v315
      %604 = vst.msk [vmem:[%s123 + $0xf8] sm:$0xff] %vm572, %v315
      %605 = vst.msk [vmem:[%s123 + $0x100] sm:$0xff] %vm572, %v319
      %606 = vst.msk [vmem:[%s123 + $0x108] sm:$0xff] %vm572, %v319
      %607 = vst.msk [vmem:[%s123 + $0x110] sm:$0xff] %vm572, %v323
      %608 = vst.msk [vmem:[%s123 + $0x118] sm:$0xff] %vm572, %v323
      %609 = vst.msk [vmem:[%s123 + $0x120] sm:$0xff] %vm572, %v327
      %610 = vst.msk [vmem:[%s123 + $0x128] sm:$0xff] %vm572, %v327
      %611 = vst.msk [vmem:[%s123 + $0x130] sm:$0xff] %vm572, %v331
      %612 = vst.msk [vmem:[%s123 + $0x138] sm:$0xff] %vm572, %v331
      %613 = vst.msk [vmem:[%s123 + $0x140] sm:$0xff] %vm572, %v335
      %614 = vst.msk [vmem:[%s123 + $0x148] sm:$0xff] %vm572, %v335
      %615 = vst.msk [vmem:[%s123 + $0x150] sm:$0xff] %vm572, %v339
      %616 = vst.msk [vmem:[%s123 + $0x158] sm:$0xff] %vm572, %v339
      %617 = vst.msk [vmem:[%s123 + $0x160] sm:$0xff] %vm572, %v343
      %618 = vst.msk [vmem:[%s123 + $0x168] sm:$0xff] %vm572, %v343
      %619 = vst.msk [vmem:[%s123 + $0x170] sm:$0xff] %vm572, %v347
      %620 = vst.msk [vmem:[%s123 + $0x178] sm:$0xff] %vm572, %v347
      %621 = vst.msk [vmem:[%s123 + $0x180] sm:$0xff] %vm572, %v351
      %622 = vst.msk [vmem:[%s123 + $0x188] sm:$0xff] %vm572, %v351
      %623 = vst.msk [vmem:[%s123 + $0x190] sm:$0xff] %vm572, %v355
      %624 = vst.msk [vmem:[%s123 + $0x198] sm:$0xff] %vm572, %v355
      %625 = vst.msk [vmem:[%s123 + $0x1a0] sm:$0xff] %vm572, %v359
      %626 = vst.msk [vmem:[%s123 + $0x1a8] sm:$0xff] %vm572, %v359
      %627 = vst.msk [vmem:[%s123 + $0x1b0] sm:$0xff] %vm572, %v363
      %628 = vst.msk [vmem:[%s123 + $0x1b8] sm:$0xff] %vm572, %v363
      %629 = vst.msk [vmem:[%s123 + $0x1c0] sm:$0xff] %vm572, %v367
      %630 = vst.msk [vmem:[%s123 + $0x1c8] sm:$0xff] %vm572, %v367
      %631 = vst.msk [vmem:[%s123 + $0x1d0] sm:$0xff] %vm572, %v371
      %632 = vst.msk [vmem:[%s123 + $0x1d8] sm:$0xff] %vm572, %v371
      %633 = vst.msk [vmem:[%s123 + $0x1e0] sm:$0xff] %vm572, %v375
      %634 = vst.msk [vmem:[%s123 + $0x1e8] sm:$0xff] %vm572, %v375
      %635 = vst.msk [vmem:[%s123 + $0x1f0] sm:$0xff] %vm572, %v379
      %636 = vst.msk [vmem:[%s123 + $0x1f8] sm:$0xff] %vm572, %v379
      %637 = vst.msk [vmem:[%s123 + $0x200] sm:$0xff] %vm572, %v383
      %638 = vst.msk [vmem:[%s123 + $0x208] sm:$0xff] %vm572, %v383
      %639 = vst.msk [vmem:[%s123 + $0x210] sm:$0xff] %vm572, %v387
      %640 = vst.msk [vmem:[%s123 + $0x218] sm:$0xff] %vm572, %v387
      %641 = vst.msk [vmem:[%s123 + $0x220] sm:$0xff] %vm572, %v391
      %642 = vst.msk [vmem:[%s123 + $0x228] sm:$0xff] %vm572, %v391
      %643 = vst.msk [vmem:[%s123 + $0x230] sm:$0xff] %vm572, %v395
      %644 = vst.msk [vmem:[%s123 + $0x238] sm:$0xff] %vm572, %v395
      %645 = vst.msk [vmem:[%s123 + $0x240] sm:$0xff] %vm572, %v399
      %646 = vst.msk [vmem:[%s123 + $0x248] sm:$0xff] %vm572, %v399
      %647 = vst.msk [vmem:[%s123 + $0x250] sm:$0xff] %vm572, %v403
      %648 = vst.msk [vmem:[%s123 + $0x258] sm:$0xff] %vm572, %v403
      %649 = vst.msk [vmem:[%s123 + $0x260] sm:$0xff] %vm572, %v407
      %650 = vst.msk [vmem:[%s123 + $0x268] sm:$0xff] %vm572, %v407
      %651 = vst.msk [vmem:[%s123 + $0x270] sm:$0xff] %vm572, %v411
      %652 = vst.msk [vmem:[%s123 + $0x278] sm:$0xff] %vm572, %v411
      %653 = vst.msk [vmem:[%s123 + $0x280] sm:$0xff] %vm572, %v415
      %654 = vst.msk [vmem:[%s123 + $0x288] sm:$0xff] %vm572, %v415
      %655 = vst.msk [vmem:[%s123 + $0x290] sm:$0xff] %vm572, %v419
      %656 = vst.msk [vmem:[%s123 + $0x298] sm:$0xff] %vm572, %v419
      %657 = vst.msk [vmem:[%s123 + $0x2a0] sm:$0xff] %vm572, %v423
      %658 = vst.msk [vmem:[%s123 + $0x2a8] sm:$0xff] %vm572, %v423
      %659 = vst.msk [vmem:[%s123 + $0x2b0] sm:$0xff] %vm572, %v427
      %660 = vst.msk [vmem:[%s123 + $0x2b8] sm:$0xff] %vm572, %v427
      %661 = vst.msk [vmem:[%s123 + $0x2c0] sm:$0xff] %vm572, %v431
      %662 = vst.msk [vmem:[%s123 + $0x2c8] sm:$0xff] %vm572, %v431
      %663 = vst.msk [vmem:[%s123 + $0x2d0] sm:$0xff] %vm572, %v435
      %664 = vst.msk [vmem:[%s123 + $0x2d8] sm:$0xff] %vm572, %v435
      %665 = vst.msk [vmem:[%s123 + $0x2e0] sm:$0xff] %vm572, %v439
      %666 = vst.msk [vmem:[%s123 + $0x2e8] sm:$0xff] %vm572, %v439
      %667 = vst.msk [vmem:[%s123 + $0x2f0] sm:$0xff] %vm572, %v443
      %668 = vst.msk [vmem:[%s123 + $0x2f8] sm:$0xff] %vm572, %v443
      %669 = vst.msk [vmem:[%s123 + $0x300] sm:$0xff] %vm572, %v447
      %670 = vst.msk [vmem:[%s123 + $0x308] sm:$0xff] %vm572, %v447
      %671 = vst.msk [vmem:[%s123 + $0x310] sm:$0xff] %vm572, %v451
      %672 = vst.msk [vmem:[%s123 + $0x318] sm:$0xff] %vm572, %v451
      %673 = vst.msk [vmem:[%s123 + $0x320] sm:$0xff] %vm572, %v455
      %674 = vst.msk [vmem:[%s123 + $0x328] sm:$0xff] %vm572, %v455
      %675 = vst.msk [vmem:[%s123 + $0x330] sm:$0xff] %vm572, %v459
      %676 = vst.msk [vmem:[%s123 + $0x338] sm:$0xff] %vm572, %v459
      %677 = vst.msk [vmem:[%s123 + $0x340] sm:$0xff] %vm572, %v463
      %678 = vst.msk [vmem:[%s123 + $0x348] sm:$0xff] %vm572, %v463
      %679 = vst.msk [vmem:[%s123 + $0x350] sm:$0xff] %vm572, %v467
      %680 = vst.msk [vmem:[%s123 + $0x358] sm:$0xff] %vm572, %v467
      %681 = vst.msk [vmem:[%s123 + $0x360] sm:$0xff] %vm572, %v471
      %682 = vst.msk [vmem:[%s123 + $0x368] sm:$0xff] %vm572, %v471
      %683 = vst.msk [vmem:[%s123 + $0x370] sm:$0xff] %vm572, %v475
      %684 = vst.msk [vmem:[%s123 + $0x378] sm:$0xff] %vm572, %v475
      %685 = vst.msk [vmem:[%s123 + $0x380] sm:$0xff] %vm572, %v479
      %686 = vst.msk [vmem:[%s123 + $0x388] sm:$0xff] %vm572, %v479
      %687 = vst.msk [vmem:[%s123 + $0x390] sm:$0xff] %vm572, %v483
      %688 = vst.msk [vmem:[%s123 + $0x398] sm:$0xff] %vm572, %v483
      %689 = vst.msk [vmem:[%s123 + $0x3a0] sm:$0xff] %vm572, %v487
      %690 = vst.msk [vmem:[%s123 + $0x3a8] sm:$0xff] %vm572, %v487
      %691 = vst.msk [vmem:[%s123 + $0x3b0] sm:$0xff] %vm572, %v491
      %692 = vst.msk [vmem:[%s123 + $0x3b8] sm:$0xff] %vm572, %v491
      %693 = vst.msk [vmem:[%s123 + $0x3c0] sm:$0xff] %vm572, %v495
      %694 = vst.msk [vmem:[%s123 + $0x3c8] sm:$0xff] %vm572, %v495
      %695 = vst.msk [vmem:[%s123 + $0x3d0] sm:$0xff] %vm572, %v499
      %696 = vst.msk [vmem:[%s123 + $0x3d8] sm:$0xff] %vm572, %v499
      %697 = vst.msk [vmem:[%s123 + $0x3e0] sm:$0xff] %vm572, %v503
      %698 = vst.msk [vmem:[%s123 + $0x3e8] sm:$0xff] %vm572, %v503
      %699 = vst.msk [vmem:[%s123 + $0x3f0] sm:$0xff] %vm572, %v507
      %700 = vst.msk [vmem:[%s123 + $0x3f8] sm:$0xff] %vm572, %v507
      %v701 = vld [vmem:[%s1] sm:$0xff]
      %v702 = vld [vmem:[%s1 + $0x8] sm:$0xff]
      %v703 = vld [vmem:[%s1 + $0x10] sm:$0xff]
      %v704 = vld [vmem:[%s1 + $0x18] sm:$0xff]
      %v705 = vld [vmem:[%s1 + $0x20] sm:$0xff]
      %v706 = vld [vmem:[%s1 + $0x28] sm:$0xff]
      %v707 = vld [vmem:[%s1 + $0x30] sm:$0xff]
      %v708 = vld [vmem:[%s1 + $0x38] sm:$0xff]
      %v709 = vld [vmem:[%s1 + $0x40] sm:$0xff]
      %v710 = vld [vmem:[%s1 + $0x48] sm:$0xff]
      %v711 = vld [vmem:[%s1 + $0x50] sm:$0xff]
      %v712 = vld [vmem:[%s1 + $0x58] sm:$0xff]
      %v713 = vld [vmem:[%s1 + $0x60] sm:$0xff]
      %v714 = vld [vmem:[%s1 + $0x68] sm:$0xff]
      %v715 = vld [vmem:[%s1 + $0x70] sm:$0xff]
      %v716 = vld [vmem:[%s1 + $0x78] sm:$0xff]
      %v717 = vld [vmem:[%s1 + $0x80] sm:$0xff]
      %v718 = vld [vmem:[%s1 + $0x88] sm:$0xff]
      %v719 = vld [vmem:[%s1 + $0x90] sm:$0xff]
      %v720 = vld [vmem:[%s1 + $0x98] sm:$0xff]
      %v721 = vld [vmem:[%s1 + $0xa0] sm:$0xff]
      %v722 = vld [vmem:[%s1 + $0xa8] sm:$0xff]
      %v723 = vld [vmem:[%s1 + $0xb0] sm:$0xff]
      %v724 = vld [vmem:[%s1 + $0xb8] sm:$0xff]
      %v725 = vld [vmem:[%s1 + $0xc0] sm:$0xff]
      %v726 = vld [vmem:[%s1 + $0xc8] sm:$0xff]
      %v727 = vld [vmem:[%s1 + $0xd0] sm:$0xff]
      %v728 = vld [vmem:[%s1 + $0xd8] sm:$0xff]
      %v729 = vld [vmem:[%s1 + $0xe0] sm:$0xff]
      %v730 = vld [vmem:[%s1 + $0xe8] sm:$0xff]
      %v731 = vld [vmem:[%s1 + $0xf0] sm:$0xff]
      %v732 = vld [vmem:[%s1 + $0xf8] sm:$0xff]
      %v733 = vld [vmem:[%s1 + $0x100] sm:$0xff]
      %v734 = vld [vmem:[%s1 + $0x108] sm:$0xff]
      %v735 = vld [vmem:[%s1 + $0x110] sm:$0xff]
      %v736 = vld [vmem:[%s1 + $0x118] sm:$0xff]
      %v737 = vld [vmem:[%s1 + $0x120] sm:$0xff]
      %v738 = vld [vmem:[%s1 + $0x128] sm:$0xff]
      %v739 = vld [vmem:[%s1 + $0x130] sm:$0xff]
      %v740 = vld [vmem:[%s1 + $0x138] sm:$0xff]
      %v741 = vld [vmem:[%s1 + $0x140] sm:$0xff]
      %v742 = vld [vmem:[%s1 + $0x148] sm:$0xff]
      %v743 = vld [vmem:[%s1 + $0x150] sm:$0xff]
      %v744 = vld [vmem:[%s1 + $0x158] sm:$0xff]
      %v745 = vld [vmem:[%s1 + $0x160] sm:$0xff]
      %v746 = vld [vmem:[%s1 + $0x168] sm:$0xff]
      %v747 = vld [vmem:[%s1 + $0x170] sm:$0xff]
      %v748 = vld [vmem:[%s1 + $0x178] sm:$0xff]
      %v749 = vld [vmem:[%s1 + $0x180] sm:$0xff]
      %v750 = vld [vmem:[%s1 + $0x188] sm:$0xff]
      %v751 = vld [vmem:[%s1 + $0x190] sm:$0xff]
      %v752 = vld [vmem:[%s1 + $0x198] sm:$0xff]
      %v753 = vld [vmem:[%s1 + $0x1a0] sm:$0xff]
      %v754 = vld [vmem:[%s1 + $0x1a8] sm:$0xff]
      %v755 = vld [vmem:[%s1 + $0x1b0] sm:$0xff]
      %v756 = vld [vmem:[%s1 + $0x1b8] sm:$0xff]
      %v757 = vld [vmem:[%s1 + $0x1c0] sm:$0xff]
      %v758 = vld [vmem:[%s1 + $0x1c8] sm:$0xff]
      %v759 = vld [vmem:[%s1 + $0x1d0] sm:$0xff]
      %v760 = vld [vmem:[%s1 + $0x1d8] sm:$0xff]
      %v761 = vld [vmem:[%s1 + $0x1e0] sm:$0xff]
      %v762 = vld [vmem:[%s1 + $0x1e8] sm:$0xff]
      %v763 = vld [vmem:[%s1 + $0x1f0] sm:$0xff]
      %v764 = vld [vmem:[%s1 + $0x1f8] sm:$0xff]
      %v765 = vld [vmem:[%s1 + $0x200] sm:$0xff]
      %v766 = vld [vmem:[%s1 + $0x208] sm:$0xff]
      %v767 = vld [vmem:[%s1 + $0x210] sm:$0xff]
      %v768 = vld [vmem:[%s1 + $0x218] sm:$0xff]
      %v769 = vld [vmem:[%s1 + $0x220] sm:$0xff]
      %v770 = vld [vmem:[%s1 + $0x228] sm:$0xff]
      %v771 = vld [vmem:[%s1 + $0x230] sm:$0xff]
      %v772 = vld [vmem:[%s1 + $0x238] sm:$0xff]
      %v773 = vld [vmem:[%s1 + $0x240] sm:$0xff]
      %v774 = vld [vmem:[%s1 + $0x248] sm:$0xff]
      %v775 = vld [vmem:[%s1 + $0x250] sm:$0xff]
      %v776 = vld [vmem:[%s1 + $0x258] sm:$0xff]
      %v777 = vld [vmem:[%s1 + $0x260] sm:$0xff]
      %v778 = vld [vmem:[%s1 + $0x268] sm:$0xff]
      %v779 = vld [vmem:[%s1 + $0x270] sm:$0xff]
      %v780 = vld [vmem:[%s1 + $0x278] sm:$0xff]
      %v781 = vld [vmem:[%s1 + $0x280] sm:$0xff]
      %v782 = vld [vmem:[%s1 + $0x288] sm:$0xff]
      %v783 = vld [vmem:[%s1 + $0x290] sm:$0xff]
      %v784 = vld [vmem:[%s1 + $0x298] sm:$0xff]
      %v785 = vld [vmem:[%s1 + $0x2a0] sm:$0xff]
      %v786 = vld [vmem:[%s1 + $0x2a8] sm:$0xff]
      %v787 = vld [vmem:[%s1 + $0x2b0] sm:$0xff]
      %v788 = vld [vmem:[%s1 + $0x2b8] sm:$0xff]
      %v789 = vld [vmem:[%s1 + $0x2c0] sm:$0xff]
      %v790 = vld [vmem:[%s1 + $0x2c8] sm:$0xff]
      %v791 = vld [vmem:[%s1 + $0x2d0] sm:$0xff]
      %v792 = vld [vmem:[%s1 + $0x2d8] sm:$0xff]
      %v793 = vld [vmem:[%s1 + $0x2e0] sm:$0xff]
      %v794 = vld [vmem:[%s1 + $0x2e8] sm:$0xff]
      %v795 = vld [vmem:[%s1 + $0x2f0] sm:$0xff]
      %v796 = vld [vmem:[%s1 + $0x2f8] sm:$0xff]
      %v797 = vld [vmem:[%s1 + $0x300] sm:$0xff]
      %v798 = vld [vmem:[%s1 + $0x308] sm:$0xff]
      %v799 = vld [vmem:[%s1 + $0x310] sm:$0xff]
      %v800 = vld [vmem:[%s1 + $0x318] sm:$0xff]
      %v801 = vld [vmem:[%s1 + $0x320] sm:$0xff]
      %v802 = vld [vmem:[%s1 + $0x328] sm:$0xff]
      %v803 = vld [vmem:[%s1 + $0x330] sm:$0xff]
      %v804 = vld [vmem:[%s1 + $0x338] sm:$0xff]
      %v805 = vld [vmem:[%s1 + $0x340] sm:$0xff]
      %v806 = vld [vmem:[%s1 + $0x348] sm:$0xff]
      %v807 = vld [vmem:[%s1 + $0x350] sm:$0xff]
      %v808 = vld [vmem:[%s1 + $0x358] sm:$0xff]
      %v809 = vld [vmem:[%s1 + $0x360] sm:$0xff]
      %v810 = vld [vmem:[%s1 + $0x368] sm:$0xff]
      %v811 = vld [vmem:[%s1 + $0x370] sm:$0xff]
      %v812 = vld [vmem:[%s1 + $0x378] sm:$0xff]
      %v813 = vld [vmem:[%s1 + $0x380] sm:$0xff]
      %v814 = vld [vmem:[%s1 + $0x388] sm:$0xff]
      %v815 = vld [vmem:[%s1 + $0x390] sm:$0xff]
      %v816 = vld [vmem:[%s1 + $0x398] sm:$0xff]
      %v817 = vld [vmem:[%s1 + $0x3a0] sm:$0xff]
      %v818 = vld [vmem:[%s1 + $0x3a8] sm:$0xff]
      %v819 = vld [vmem:[%s1 + $0x3b0] sm:$0xff]
      %v820 = vld [vmem:[%s1 + $0x3b8] sm:$0xff]
      %v821 = vld [vmem:[%s1 + $0x3c0] sm:$0xff]
      %v822 = vld [vmem:[%s1 + $0x3c8] sm:$0xff]
      %v823 = vld [vmem:[%s1 + $0x3d0] sm:$0xff]
      %v824 = vld [vmem:[%s1 + $0x3d8] sm:$0xff]
      %v825 = vld [vmem:[%s1 + $0x3e0] sm:$0xff]
      %v826 = vld [vmem:[%s1 + $0x3e8] sm:$0xff]
      %v827 = vld [vmem:[%s1 + $0x3f0] sm:$0xff]
      %v828 = vld [vmem:[%s1 + $0x3f8] sm:$0xff]
      %830 = vset.pattern.permute.xlu0 0
      %831 = vperm.xlu0 %830, %v701
      %v832 = vpop.permute.xlu0 %831
      %835 = vset.pattern.permute.xlu0 0
      %836 = vperm.xlu0 %835, %v702
      %v837 = vpop.permute.xlu0 %836
      %840 = vset.pattern.permute.xlu0 0
      %841 = vperm.xlu0 %840, %v703
      %v842 = vpop.permute.xlu0 %841
      %845 = vset.pattern.permute.xlu0 0
      %846 = vperm.xlu0 %845, %v704
      %v847 = vpop.permute.xlu0 %846
      %850 = vset.pattern.permute.xlu0 0
      %851 = vperm.xlu0 %850, %v705
      %v852 = vpop.permute.xlu0 %851
      %855 = vset.pattern.permute.xlu0 0
      %856 = vperm.xlu0 %855, %v706
      %v857 = vpop.permute.xlu0 %856
      %860 = vset.pattern.permute.xlu0 0
      %861 = vperm.xlu0 %860, %v707
      %v862 = vpop.permute.xlu0 %861
      %865 = vset.pattern.permute.xlu0 0
      %866 = vperm.xlu0 %865, %v708
      %v867 = vpop.permute.xlu0 %866
      %870 = vset.pattern.permute.xlu0 0
      %871 = vperm.xlu0 %870, %v709
      %v872 = vpop.permute.xlu0 %871
      %875 = vset.pattern.permute.xlu0 0
      %876 = vperm.xlu0 %875, %v710
      %v877 = vpop.permute.xlu0 %876
      %880 = vset.pattern.permute.xlu0 0
      %881 = vperm.xlu0 %880, %v711
      %v882 = vpop.permute.xlu0 %881
      %885 = vset.pattern.permute.xlu0 0
      %886 = vperm.xlu0 %885, %v712
      %v887 = vpop.permute.xlu0 %886
      %890 = vset.pattern.permute.xlu0 0
      %891 = vperm.xlu0 %890, %v713
      %v892 = vpop.permute.xlu0 %891
      %895 = vset.pattern.permute.xlu0 0
      %896 = vperm.xlu0 %895, %v714
      %v897 = vpop.permute.xlu0 %896
      %900 = vset.pattern.permute.xlu0 0
      %901 = vperm.xlu0 %900, %v715
      %v902 = vpop.permute.xlu0 %901
      %905 = vset.pattern.permute.xlu0 0
      %906 = vperm.xlu0 %905, %v716
      %v907 = vpop.permute.xlu0 %906
      %910 = vset.pattern.permute.xlu0 0
      %911 = vperm.xlu0 %910, %v717
      %v912 = vpop.permute.xlu0 %911
      %915 = vset.pattern.permute.xlu0 0
      %916 = vperm.xlu0 %915, %v718
      %v917 = vpop.permute.xlu0 %916
      %920 = vset.pattern.permute.xlu0 0
      %921 = vperm.xlu0 %920, %v719
      %v922 = vpop.permute.xlu0 %921
      %925 = vset.pattern.permute.xlu0 0
      %926 = vperm.xlu0 %925, %v720
      %v927 = vpop.permute.xlu0 %926
      %930 = vset.pattern.permute.xlu0 0
      %931 = vperm.xlu0 %930, %v721
      %v932 = vpop.permute.xlu0 %931
      %935 = vset.pattern.permute.xlu0 0
      %936 = vperm.xlu0 %935, %v722
      %v937 = vpop.permute.xlu0 %936
      %940 = vset.pattern.permute.xlu0 0
      %941 = vperm.xlu0 %940, %v723
      %v942 = vpop.permute.xlu0 %941
      %945 = vset.pattern.permute.xlu0 0
      %946 = vperm.xlu0 %945, %v724
      %v947 = vpop.permute.xlu0 %946
      %950 = vset.pattern.permute.xlu0 0
      %951 = vperm.xlu0 %950, %v725
      %v952 = vpop.permute.xlu0 %951
      %955 = vset.pattern.permute.xlu0 0
      %956 = vperm.xlu0 %955, %v726
      %v957 = vpop.permute.xlu0 %956
      %960 = vset.pattern.permute.xlu0 0
      %961 = vperm.xlu0 %960, %v727
      %v962 = vpop.permute.xlu0 %961
      %965 = vset.pattern.permute.xlu0 0
      %966 = vperm.xlu0 %965, %v728
      %v967 = vpop.permute.xlu0 %966
      %970 = vset.pattern.permute.xlu0 0
      %971 = vperm.xlu0 %970, %v729
      %v972 = vpop.permute.xlu0 %971
      %975 = vset.pattern.permute.xlu0 0
      %976 = vperm.xlu0 %975, %v730
      %v977 = vpop.permute.xlu0 %976
      %980 = vset.pattern.permute.xlu0 0
      %981 = vperm.xlu0 %980, %v731
      %v982 = vpop.permute.xlu0 %981
      %985 = vset.pattern.permute.xlu0 0
      %986 = vperm.xlu0 %985, %v732
      %v987 = vpop.permute.xlu0 %986
      %990 = vset.pattern.permute.xlu0 0
      %991 = vperm.xlu0 %990, %v733
      %v992 = vpop.permute.xlu0 %991
      %995 = vset.pattern.permute.xlu0 0
      %996 = vperm.xlu0 %995, %v734
      %v997 = vpop.permute.xlu0 %996
      %1000 = vset.pattern.permute.xlu0 0
      %1001 = vperm.xlu0 %1000, %v735
      %v1002 = vpop.permute.xlu0 %1001
      %1005 = vset.pattern.permute.xlu0 0
      %1006 = vperm.xlu0 %1005, %v736
      %v1007 = vpop.permute.xlu0 %1006
      %1010 = vset.pattern.permute.xlu0 0
      %1011 = vperm.xlu0 %1010, %v737
      %v1012 = vpop.permute.xlu0 %1011
      %1015 = vset.pattern.permute.xlu0 0
      %1016 = vperm.xlu0 %1015, %v738
      %v1017 = vpop.permute.xlu0 %1016
      %1020 = vset.pattern.permute.xlu0 0
      %1021 = vperm.xlu0 %1020, %v739
      %v1022 = vpop.permute.xlu0 %1021
      %1025 = vset.pattern.permute.xlu0 0
      %1026 = vperm.xlu0 %1025, %v740
      %v1027 = vpop.permute.xlu0 %1026
      %1030 = vset.pattern.permute.xlu0 0
      %1031 = vperm.xlu0 %1030, %v741
      %v1032 = vpop.permute.xlu0 %1031
      %1035 = vset.pattern.permute.xlu0 0
      %1036 = vperm.xlu0 %1035, %v742
      %v1037 = vpop.permute.xlu0 %1036
      %1040 = vset.pattern.permute.xlu0 0
      %1041 = vperm.xlu0 %1040, %v743
      %v1042 = vpop.permute.xlu0 %1041
      %1045 = vset.pattern.permute.xlu0 0
      %1046 = vperm.xlu0 %1045, %v744
      %v1047 = vpop.permute.xlu0 %1046
      %1050 = vset.pattern.permute.xlu0 0
      %1051 = vperm.xlu0 %1050, %v745
      %v1052 = vpop.permute.xlu0 %1051
      %1055 = vset.pattern.permute.xlu0 0
      %1056 = vperm.xlu0 %1055, %v746
      %v1057 = vpop.permute.xlu0 %1056
      %1060 = vset.pattern.permute.xlu0 0
      %1061 = vperm.xlu0 %1060, %v747
      %v1062 = vpop.permute.xlu0 %1061
      %1065 = vset.pattern.permute.xlu0 0
      %1066 = vperm.xlu0 %1065, %v748
      %v1067 = vpop.permute.xlu0 %1066
      %1070 = vset.pattern.permute.xlu0 0
      %1071 = vperm.xlu0 %1070, %v749
      %v1072 = vpop.permute.xlu0 %1071
      %1075 = vset.pattern.permute.xlu0 0
      %1076 = vperm.xlu0 %1075, %v750
      %v1077 = vpop.permute.xlu0 %1076
      %1080 = vset.pattern.permute.xlu0 0
      %1081 = vperm.xlu0 %1080, %v751
      %v1082 = vpop.permute.xlu0 %1081
      %1085 = vset.pattern.permute.xlu0 0
      %1086 = vperm.xlu0 %1085, %v752
      %v1087 = vpop.permute.xlu0 %1086
      %1090 = vset.pattern.permute.xlu0 0
      %1091 = vperm.xlu0 %1090, %v753
      %v1092 = vpop.permute.xlu0 %1091
      %1095 = vset.pattern.permute.xlu0 0
      %1096 = vperm.xlu0 %1095, %v754
      %v1097 = vpop.permute.xlu0 %1096
      %1100 = vset.pattern.permute.xlu0 0
      %1101 = vperm.xlu0 %1100, %v755
      %v1102 = vpop.permute.xlu0 %1101
      %1105 = vset.pattern.permute.xlu0 0
      %1106 = vperm.xlu0 %1105, %v756
      %v1107 = vpop.permute.xlu0 %1106
      %1110 = vset.pattern.permute.xlu0 0
      %1111 = vperm.xlu0 %1110, %v757
      %v1112 = vpop.permute.xlu0 %1111
      %1115 = vset.pattern.permute.xlu0 0
      %1116 = vperm.xlu0 %1115, %v758
      %v1117 = vpop.permute.xlu0 %1116
      %1120 = vset.pattern.permute.xlu0 0
      %1121 = vperm.xlu0 %1120, %v759
      %v1122 = vpop.permute.xlu0 %1121
      %1125 = vset.pattern.permute.xlu0 0
      %1126 = vperm.xlu0 %1125, %v760
      %v1127 = vpop.permute.xlu0 %1126
      %1130 = vset.pattern.permute.xlu0 0
      %1131 = vperm.xlu0 %1130, %v761
      %v1132 = vpop.permute.xlu0 %1131
      %1135 = vset.pattern.permute.xlu0 0
      %1136 = vperm.xlu0 %1135, %v762
      %v1137 = vpop.permute.xlu0 %1136
      %1140 = vset.pattern.permute.xlu0 0
      %1141 = vperm.xlu0 %1140, %v763
      %v1142 = vpop.permute.xlu0 %1141
      %1145 = vset.pattern.permute.xlu0 0
      %1146 = vperm.xlu0 %1145, %v764
      %v1147 = vpop.permute.xlu0 %1146
      %1150 = vset.pattern.permute.xlu0 0
      %1151 = vperm.xlu0 %1150, %v765
      %v1152 = vpop.permute.xlu0 %1151
      %1155 = vset.pattern.permute.xlu0 0
      %1156 = vperm.xlu0 %1155, %v766
      %v1157 = vpop.permute.xlu0 %1156
      %1160 = vset.pattern.permute.xlu0 0
      %1161 = vperm.xlu0 %1160, %v767
      %v1162 = vpop.permute.xlu0 %1161
      %1165 = vset.pattern.permute.xlu0 0
      %1166 = vperm.xlu0 %1165, %v768
      %v1167 = vpop.permute.xlu0 %1166
      %1170 = vset.pattern.permute.xlu0 0
      %1171 = vperm.xlu0 %1170, %v769
      %v1172 = vpop.permute.xlu0 %1171
      %1175 = vset.pattern.permute.xlu0 0
      %1176 = vperm.xlu0 %1175, %v770
      %v1177 = vpop.permute.xlu0 %1176
      %1180 = vset.pattern.permute.xlu0 0
      %1181 = vperm.xlu0 %1180, %v771
      %v1182 = vpop.permute.xlu0 %1181
      %1185 = vset.pattern.permute.xlu0 0
      %1186 = vperm.xlu0 %1185, %v772
      %v1187 = vpop.permute.xlu0 %1186
      %1190 = vset.pattern.permute.xlu0 0
      %1191 = vperm.xlu0 %1190, %v773
      %v1192 = vpop.permute.xlu0 %1191
      %1195 = vset.pattern.permute.xlu0 0
      %1196 = vperm.xlu0 %1195, %v774
      %v1197 = vpop.permute.xlu0 %1196
      %1200 = vset.pattern.permute.xlu0 0
      %1201 = vperm.xlu0 %1200, %v775
      %v1202 = vpop.permute.xlu0 %1201
      %1205 = vset.pattern.permute.xlu0 0
      %1206 = vperm.xlu0 %1205, %v776
      %v1207 = vpop.permute.xlu0 %1206
      %1210 = vset.pattern.permute.xlu0 0
      %1211 = vperm.xlu0 %1210, %v777
      %v1212 = vpop.permute.xlu0 %1211
      %1215 = vset.pattern.permute.xlu0 0
      %1216 = vperm.xlu0 %1215, %v778
      %v1217 = vpop.permute.xlu0 %1216
      %1220 = vset.pattern.permute.xlu0 0
      %1221 = vperm.xlu0 %1220, %v779
      %v1222 = vpop.permute.xlu0 %1221
      %1225 = vset.pattern.permute.xlu0 0
      %1226 = vperm.xlu0 %1225, %v780
      %v1227 = vpop.permute.xlu0 %1226
      %1230 = vset.pattern.permute.xlu0 0
      %1231 = vperm.xlu0 %1230, %v781
      %v1232 = vpop.permute.xlu0 %1231
      %1235 = vset.pattern.permute.xlu0 0
      %1236 = vperm.xlu0 %1235, %v782
      %v1237 = vpop.permute.xlu0 %1236
      %1240 = vset.pattern.permute.xlu0 0
      %1241 = vperm.xlu0 %1240, %v783
      %v1242 = vpop.permute.xlu0 %1241
      %1245 = vset.pattern.permute.xlu0 0
      %1246 = vperm.xlu0 %1245, %v784
      %v1247 = vpop.permute.xlu0 %1246
      %1250 = vset.pattern.permute.xlu0 0
      %1251 = vperm.xlu0 %1250, %v785
      %v1252 = vpop.permute.xlu0 %1251
      %1255 = vset.pattern.permute.xlu0 0
      %1256 = vperm.xlu0 %1255, %v786
      %v1257 = vpop.permute.xlu0 %1256
      %1260 = vset.pattern.permute.xlu0 0
      %1261 = vperm.xlu0 %1260, %v787
      %v1262 = vpop.permute.xlu0 %1261
      %1265 = vset.pattern.permute.xlu0 0
      %1266 = vperm.xlu0 %1265, %v788
      %v1267 = vpop.permute.xlu0 %1266
      %1270 = vset.pattern.permute.xlu0 0
      %1271 = vperm.xlu0 %1270, %v789
      %v1272 = vpop.permute.xlu0 %1271
      %1275 = vset.pattern.permute.xlu0 0
      %1276 = vperm.xlu0 %1275, %v790
      %v1277 = vpop.permute.xlu0 %1276
      %1280 = vset.pattern.permute.xlu0 0
      %1281 = vperm.xlu0 %1280, %v791
      %v1282 = vpop.permute.xlu0 %1281
      %1285 = vset.pattern.permute.xlu0 0
      %1286 = vperm.xlu0 %1285, %v792
      %v1287 = vpop.permute.xlu0 %1286
      %1290 = vset.pattern.permute.xlu0 0
      %1291 = vperm.xlu0 %1290, %v793
      %v1292 = vpop.permute.xlu0 %1291
      %1295 = vset.pattern.permute.xlu0 0
      %1296 = vperm.xlu0 %1295, %v794
      %v1297 = vpop.permute.xlu0 %1296
      %1300 = vset.pattern.permute.xlu0 0
      %1301 = vperm.xlu0 %1300, %v795
      %v1302 = vpop.permute.xlu0 %1301
      %1305 = vset.pattern.permute.xlu0 0
      %1306 = vperm.xlu0 %1305, %v796
      %v1307 = vpop.permute.xlu0 %1306
      %1310 = vset.pattern.permute.xlu0 0
      %1311 = vperm.xlu0 %1310, %v797
      %v1312 = vpop.permute.xlu0 %1311
      %1315 = vset.pattern.permute.xlu0 0
      %1316 = vperm.xlu0 %1315, %v798
      %v1317 = vpop.permute.xlu0 %1316
      %1320 = vset.pattern.permute.xlu0 0
      %1321 = vperm.xlu0 %1320, %v799
      %v1322 = vpop.permute.xlu0 %1321
      %1325 = vset.pattern.permute.xlu0 0
      %1326 = vperm.xlu0 %1325, %v800
      %v1327 = vpop.permute.xlu0 %1326
      %1330 = vset.pattern.permute.xlu0 0
      %1331 = vperm.xlu0 %1330, %v801
      %v1332 = vpop.permute.xlu0 %1331
      %1335 = vset.pattern.permute.xlu0 0
      %1336 = vperm.xlu0 %1335, %v802
      %v1337 = vpop.permute.xlu0 %1336
      %1340 = vset.pattern.permute.xlu0 0
      %1341 = vperm.xlu0 %1340, %v803
      %v1342 = vpop.permute.xlu0 %1341
      %1345 = vset.pattern.permute.xlu0 0
      %1346 = vperm.xlu0 %1345, %v804
      %v1347 = vpop.permute.xlu0 %1346
      %1350 = vset.pattern.permute.xlu0 0
      %1351 = vperm.xlu0 %1350, %v805
      %v1352 = vpop.permute.xlu0 %1351
      %1355 = vset.pattern.permute.xlu0 0
      %1356 = vperm.xlu0 %1355, %v806
      %v1357 = vpop.permute.xlu0 %1356
      %1360 = vset.pattern.permute.xlu0 0
      %1361 = vperm.xlu0 %1360, %v807
      %v1362 = vpop.permute.xlu0 %1361
      %1365 = vset.pattern.permute.xlu0 0
      %1366 = vperm.xlu0 %1365, %v808
      %v1367 = vpop.permute.xlu0 %1366
      %1370 = vset.pattern.permute.xlu0 0
      %1371 = vperm.xlu0 %1370, %v809
      %v1372 = vpop.permute.xlu0 %1371
      %1375 = vset.pattern.permute.xlu0 0
      %1376 = vperm.xlu0 %1375, %v810
      %v1377 = vpop.permute.xlu0 %1376
      %1380 = vset.pattern.permute.xlu0 0
      %1381 = vperm.xlu0 %1380, %v811
      %v1382 = vpop.permute.xlu0 %1381
      %1385 = vset.pattern.permute.xlu0 0
      %1386 = vperm.xlu0 %1385, %v812
      %v1387 = vpop.permute.xlu0 %1386
      %1390 = vset.pattern.permute.xlu0 0
      %1391 = vperm.xlu0 %1390, %v813
      %v1392 = vpop.permute.xlu0 %1391
      %1395 = vset.pattern.permute.xlu0 0
      %1396 = vperm.xlu0 %1395, %v814
      %v1397 = vpop.permute.xlu0 %1396
      %1400 = vset.pattern.permute.xlu0 0
      %1401 = vperm.xlu0 %1400, %v815
      %v1402 = vpop.permute.xlu0 %1401
      %1405 = vset.pattern.permute.xlu0 0
      %1406 = vperm.xlu0 %1405, %v816
      %v1407 = vpop.permute.xlu0 %1406
      %1410 = vset.pattern.permute.xlu0 0
      %1411 = vperm.xlu0 %1410, %v817
      %v1412 = vpop.permute.xlu0 %1411
      %1415 = vset.pattern.permute.xlu0 0
      %1416 = vperm.xlu0 %1415, %v818
      %v1417 = vpop.permute.xlu0 %1416
      %1420 = vset.pattern.permute.xlu0 0
      %1421 = vperm.xlu0 %1420, %v819
      %v1422 = vpop.permute.xlu0 %1421
      %1425 = vset.pattern.permute.xlu0 0
      %1426 = vperm.xlu0 %1425, %v820
      %v1427 = vpop.permute.xlu0 %1426
      %1430 = vset.pattern.permute.xlu0 0
      %1431 = vperm.xlu0 %1430, %v821
      %v1432 = vpop.permute.xlu0 %1431
      %1435 = vset.pattern.permute.xlu0 0
      %1436 = vperm.xlu0 %1435, %v822
      %v1437 = vpop.permute.xlu0 %1436
      %1440 = vset.pattern.permute.xlu0 0
      %1441 = vperm.xlu0 %1440, %v823
      %v1442 = vpop.permute.xlu0 %1441
      %1445 = vset.pattern.permute.xlu0 0
      %1446 = vperm.xlu0 %1445, %v824
      %v1447 = vpop.permute.xlu0 %1446
      %1450 = vset.pattern.permute.xlu0 0
      %1451 = vperm.xlu0 %1450, %v825
      %v1452 = vpop.permute.xlu0 %1451
      %1455 = vset.pattern.permute.xlu0 0
      %1456 = vperm.xlu0 %1455, %v826
      %v1457 = vpop.permute.xlu0 %1456
      %1460 = vset.pattern.permute.xlu0 0
      %1461 = vperm.xlu0 %1460, %v827
      %v1462 = vpop.permute.xlu0 %1461
      %1465 = vset.pattern.permute.xlu0 0
      %1466 = vperm.xlu0 %1465, %v828
      %v1467 = vpop.permute.xlu0 %1466
      %s1469 = scalar_lea.vmem %s123, 1024
      %1470 = vst.msk [vmem:[%s1469] sm:$0xff] %vm572, %v832
      %1471 = vst.msk [vmem:[%s1469 + $0x8] sm:$0xff] %vm572, %v837
      %1472 = vst.msk [vmem:[%s1469 + $0x10] sm:$0xff] %vm572, %v842
      %1473 = vst.msk [vmem:[%s1469 + $0x18] sm:$0xff] %vm572, %v847
      %1474 = vst.msk [vmem:[%s1469 + $0x20] sm:$0xff] %vm572, %v852
      %1475 = vst.msk [vmem:[%s1469 + $0x28] sm:$0xff] %vm572, %v857
      %1476 = vst.msk [vmem:[%s1469 + $0x30] sm:$0xff] %vm572, %v862
      %1477 = vst.msk [vmem:[%s1469 + $0x38] sm:$0xff] %vm572, %v867
      %1478 = vst.msk [vmem:[%s1469 + $0x40] sm:$0xff] %vm572, %v872
      %1479 = vst.msk [vmem:[%s1469 + $0x48] sm:$0xff] %vm572, %v877
      %1480 = vst.msk [vmem:[%s1469 + $0x50] sm:$0xff] %vm572, %v882
      %1481 = vst.msk [vmem:[%s1469 + $0x58] sm:$0xff] %vm572, %v887
      %1482 = vst.msk [vmem:[%s1469 + $0x60] sm:$0xff] %vm572, %v892
      %1483 = vst.msk [vmem:[%s1469 + $0x68] sm:$0xff] %vm572, %v897
      %1484 = vst.msk [vmem:[%s1469 + $0x70] sm:$0xff] %vm572, %v902
      %1485 = vst.msk [vmem:[%s1469 + $0x78] sm:$0xff] %vm572, %v907
      %1486 = vst.msk [vmem:[%s1469 + $0x80] sm:$0xff] %vm572, %v912
      %1487 = vst.msk [vmem:[%s1469 + $0x88] sm:$0xff] %vm572, %v917
      %1488 = vst.msk [vmem:[%s1469 + $0x90] sm:$0xff] %vm572, %v922
      %1489 = vst.msk [vmem:[%s1469 + $0x98] sm:$0xff] %vm572, %v927
      %1490 = vst.msk [vmem:[%s1469 + $0xa0] sm:$0xff] %vm572, %v932
      %1491 = vst.msk [vmem:[%s1469 + $0xa8] sm:$0xff] %vm572, %v937
      %1492 = vst.msk [vmem:[%s1469 + $0xb0] sm:$0xff] %vm572, %v942
      %1493 = vst.msk [vmem:[%s1469 + $0xb8] sm:$0xff] %vm572, %v947
      %1494 = vst.msk [vmem:[%s1469 + $0xc0] sm:$0xff] %vm572, %v952
      %1495 = vst.msk [vmem:[%s1469 + $0xc8] sm:$0xff] %vm572, %v957
      %1496 = vst.msk [vmem:[%s1469 + $0xd0] sm:$0xff] %vm572, %v962
      %1497 = vst.msk [vmem:[%s1469 + $0xd8] sm:$0xff] %vm572, %v967
      %1498 = vst.msk [vmem:[%s1469 + $0xe0] sm:$0xff] %vm572, %v972
      %1499 = vst.msk [vmem:[%s1469 + $0xe8] sm:$0xff] %vm572, %v977
      %1500 = vst.msk [vmem:[%s1469 + $0xf0] sm:$0xff] %vm572, %v982
      %1501 = vst.msk [vmem:[%s1469 + $0xf8] sm:$0xff] %vm572, %v987
      %1502 = vst.msk [vmem:[%s1469 + $0x100] sm:$0xff] %vm572, %v992
      %1503 = vst.msk [vmem:[%s1469 + $0x108] sm:$0xff] %vm572, %v997
      %1504 = vst.msk [vmem:[%s1469 + $0x110] sm:$0xff] %vm572, %v1002
      %1505 = vst.msk [vmem:[%s1469 + $0x118] sm:$0xff] %vm572, %v1007
      %1506 = vst.msk [vmem:[%s1469 + $0x120] sm:$0xff] %vm572, %v1012
      %1507 = vst.msk [vmem:[%s1469 + $0x128] sm:$0xff] %vm572, %v1017
      %1508 = vst.msk [vmem:[%s1469 + $0x130] sm:$0xff] %vm572, %v1022
      %1509 = vst.msk [vmem:[%s1469 + $0x138] sm:$0xff] %vm572, %v1027
      %1510 = vst.msk [vmem:[%s1469 + $0x140] sm:$0xff] %vm572, %v1032
      %1511 = vst.msk [vmem:[%s1469 + $0x148] sm:$0xff] %vm572, %v1037
      %1512 = vst.msk [vmem:[%s1469 + $0x150] sm:$0xff] %vm572, %v1042
      %1513 = vst.msk [vmem:[%s1469 + $0x158] sm:$0xff] %vm572, %v1047
      %1514 = vst.msk [vmem:[%s1469 + $0x160] sm:$0xff] %vm572, %v1052
      %1515 = vst.msk [vmem:[%s1469 + $0x168] sm:$0xff] %vm572, %v1057
      %1516 = vst.msk [vmem:[%s1469 + $0x170] sm:$0xff] %vm572, %v1062
      %1517 = vst.msk [vmem:[%s1469 + $0x178] sm:$0xff] %vm572, %v1067
      %1518 = vst.msk [vmem:[%s1469 + $0x180] sm:$0xff] %vm572, %v1072
      %1519 = vst.msk [vmem:[%s1469 + $0x188] sm:$0xff] %vm572, %v1077
      %1520 = vst.msk [vmem:[%s1469 + $0x190] sm:$0xff] %vm572, %v1082
      %1521 = vst.msk [vmem:[%s1469 + $0x198] sm:$0xff] %vm572, %v1087
      %1522 = vst.msk [vmem:[%s1469 + $0x1a0] sm:$0xff] %vm572, %v1092
      %1523 = vst.msk [vmem:[%s1469 + $0x1a8] sm:$0xff] %vm572, %v1097
      %1524 = vst.msk [vmem:[%s1469 + $0x1b0] sm:$0xff] %vm572, %v1102
      %1525 = vst.msk [vmem:[%s1469 + $0x1b8] sm:$0xff] %vm572, %v1107
      %1526 = vst.msk [vmem:[%s1469 + $0x1c0] sm:$0xff] %vm572, %v1112
      %1527 = vst.msk [vmem:[%s1469 + $0x1c8] sm:$0xff] %vm572, %v1117
      %1528 = vst.msk [vmem:[%s1469 + $0x1d0] sm:$0xff] %vm572, %v1122
      %1529 = vst.msk [vmem:[%s1469 + $0x1d8] sm:$0xff] %vm572, %v1127
      %1530 = vst.msk [vmem:[%s1469 + $0x1e0] sm:$0xff] %vm572, %v1132
      %1531 = vst.msk [vmem:[%s1469 + $0x1e8] sm:$0xff] %vm572, %v1137
      %1532 = vst.msk [vmem:[%s1469 + $0x1f0] sm:$0xff] %vm572, %v1142
      %1533 = vst.msk [vmem:[%s1469 + $0x1f8] sm:$0xff] %vm572, %v1147
      %1534 = vst.msk [vmem:[%s1469 + $0x200] sm:$0xff] %vm572, %v1152
      %1535 = vst.msk [vmem:[%s1469 + $0x208] sm:$0xff] %vm572, %v1157
      %1536 = vst.msk [vmem:[%s1469 + $0x210] sm:$0xff] %vm572, %v1162
      %1537 = vst.msk [vmem:[%s1469 + $0x218] sm:$0xff] %vm572, %v1167
      %1538 = vst.msk [vmem:[%s1469 + $0x220] sm:$0xff] %vm572, %v1172
      %1539 = vst.msk [vmem:[%s1469 + $0x228] sm:$0xff] %vm572, %v1177
      %1540 = vst.msk [vmem:[%s1469 + $0x230] sm:$0xff] %vm572, %v1182
      %1541 = vst.msk [vmem:[%s1469 + $0x238] sm:$0xff] %vm572, %v1187
      %1542 = vst.msk [vmem:[%s1469 + $0x240] sm:$0xff] %vm572, %v1192
      %1543 = vst.msk [vmem:[%s1469 + $0x248] sm:$0xff] %vm572, %v1197
      %1544 = vst.msk [vmem:[%s1469 + $0x250] sm:$0xff] %vm572, %v1202
      %1545 = vst.msk [vmem:[%s1469 + $0x258] sm:$0xff] %vm572, %v1207
      %1546 = vst.msk [vmem:[%s1469 + $0x260] sm:$0xff] %vm572, %v1212
      %1547 = vst.msk [vmem:[%s1469 + $0x268] sm:$0xff] %vm572, %v1217
      %1548 = vst.msk [vmem:[%s1469 + $0x270] sm:$0xff] %vm572, %v1222
      %1549 = vst.msk [vmem:[%s1469 + $0x278] sm:$0xff] %vm572, %v1227
      %1550 = vst.msk [vmem:[%s1469 + $0x280] sm:$0xff] %vm572, %v1232
      %1551 = vst.msk [vmem:[%s1469 + $0x288] sm:$0xff] %vm572, %v1237
      %1552 = vst.msk [vmem:[%s1469 + $0x290] sm:$0xff] %vm572, %v1242
      %1553 = vst.msk [vmem:[%s1469 + $0x298] sm:$0xff] %vm572, %v1247
      %1554 = vst.msk [vmem:[%s1469 + $0x2a0] sm:$0xff] %vm572, %v1252
      %1555 = vst.msk [vmem:[%s1469 + $0x2a8] sm:$0xff] %vm572, %v1257
      %1556 = vst.msk [vmem:[%s1469 + $0x2b0] sm:$0xff] %vm572, %v1262
      %1557 = vst.msk [vmem:[%s1469 + $0x2b8] sm:$0xff] %vm572, %v1267
      %1558 = vst.msk [vmem:[%s1469 + $0x2c0] sm:$0xff] %vm572, %v1272
      %1559 = vst.msk [vmem:[%s1469 + $0x2c8] sm:$0xff] %vm572, %v1277
      %1560 = vst.msk [vmem:[%s1469 + $0x2d0] sm:$0xff] %vm572, %v1282
      %1561 = vst.msk [vmem:[%s1469 + $0x2d8] sm:$0xff] %vm572, %v1287
      %1562 = vst.msk [vmem:[%s1469 + $0x2e0] sm:$0xff] %vm572, %v1292
      %1563 = vst.msk [vmem:[%s1469 + $0x2e8] sm:$0xff] %vm572, %v1297
      %1564 = vst.msk [vmem:[%s1469 + $0x2f0] sm:$0xff] %vm572, %v1302
      %1565 = vst.msk [vmem:[%s1469 + $0x2f8] sm:$0xff] %vm572, %v1307
      %1566 = vst.msk [vmem:[%s1469 + $0x300] sm:$0xff] %vm572, %v1312
      %1567 = vst.msk [vmem:[%s1469 + $0x308] sm:$0xff] %vm572, %v1317
      %1568 = vst.msk [vmem:[%s1469 + $0x310] sm:$0xff] %vm572, %v1322
      %1569 = vst.msk [vmem:[%s1469 + $0x318] sm:$0xff] %vm572, %v1327
      %1570 = vst.msk [vmem:[%s1469 + $0x320] sm:$0xff] %vm572, %v1332
      %1571 = vst.msk [vmem:[%s1469 + $0x328] sm:$0xff] %vm572, %v1337
      %1572 = vst.msk [vmem:[%s1469 + $0x330] sm:$0xff] %vm572, %v1342
      %1573 = vst.msk [vmem:[%s1469 + $0x338] sm:$0xff] %vm572, %v1347
      %1574 = vst.msk [vmem:[%s1469 + $0x340] sm:$0xff] %vm572, %v1352
      %1575 = vst.msk [vmem:[%s1469 + $0x348] sm:$0xff] %vm572, %v1357
      %1576 = vst.msk [vmem:[%s1469 + $0x350] sm:$0xff] %vm572, %v1362
      %1577 = vst.msk [vmem:[%s1469 + $0x358] sm:$0xff] %vm572, %v1367
      %1578 = vst.msk [vmem:[%s1469 + $0x360] sm:$0xff] %vm572, %v1372
      %1579 = vst.msk [vmem:[%s1469 + $0x368] sm:$0xff] %vm572, %v1377
      %1580 = vst.msk [vmem:[%s1469 + $0x370] sm:$0xff] %vm572, %v1382
      %1581 = vst.msk [vmem:[%s1469 + $0x378] sm:$0xff] %vm572, %v1387
      %1582 = vst.msk [vmem:[%s1469 + $0x380] sm:$0xff] %vm572, %v1392
      %1583 = vst.msk [vmem:[%s1469 + $0x388] sm:$0xff] %vm572, %v1397
      %1584 = vst.msk [vmem:[%s1469 + $0x390] sm:$0xff] %vm572, %v1402
      %1585 = vst.msk [vmem:[%s1469 + $0x398] sm:$0xff] %vm572, %v1407
      %1586 = vst.msk [vmem:[%s1469 + $0x3a0] sm:$0xff] %vm572, %v1412
      %1587 = vst.msk [vmem:[%s1469 + $0x3a8] sm:$0xff] %vm572, %v1417
      %1588 = vst.msk [vmem:[%s1469 + $0x3b0] sm:$0xff] %vm572, %v1422
      %1589 = vst.msk [vmem:[%s1469 + $0x3b8] sm:$0xff] %vm572, %v1427
      %1590 = vst.msk [vmem:[%s1469 + $0x3c0] sm:$0xff] %vm572, %v1432
      %1591 = vst.msk [vmem:[%s1469 + $0x3c8] sm:$0xff] %vm572, %v1437
      %1592 = vst.msk [vmem:[%s1469 + $0x3d0] sm:$0xff] %vm572, %v1442
      %1593 = vst.msk [vmem:[%s1469 + $0x3d8] sm:$0xff] %vm572, %v1447
      %1594 = vst.msk [vmem:[%s1469 + $0x3e0] sm:$0xff] %vm572, %v1452
      %1595 = vst.msk [vmem:[%s1469 + $0x3e8] sm:$0xff] %vm572, %v1457
      %1596 = vst.msk [vmem:[%s1469 + $0x3f0] sm:$0xff] %vm572, %v1462
      %1597 = vst.msk [vmem:[%s1469 + $0x3f8] sm:$0xff] %vm572, %v1467
      %p1598 = scmp.lt.s32.totalorder %s13, 1
      %s1599 = scalar_select %p1598, %s13, 1
      %s1600 = smul.addr %s1599, 256
      %s1601 = smul.addr %s1600, 8
      %s1602 = scalar_lea.vmem %s2, %s1601
      // Predicated region
      $region29: #{learned_position_embedding.1} parent=27 // pred_check
        %p1603 = pneg %p73
      $region30: #{learned_position_embedding.1} parent=27 // pred_check_branch
        %1605 = sbr.rel (%p1603) target = $region32
      $region31: #{learned_position_embedding.1} parent=27 // pred_region
        _
      $region32: #{learned_position_embedding.1} parent=27 // pred_fallthru
        _
    $region28: #{learned_position_embedding.1} parent=5 // pred_fallthru
      _
    %p1606 = scmp.le.s32.totalorder 2, %s8
    // Predicated region
    $region33: #{learned_position_embedding.1} parent=5 // pred_check
      %p1607 = pneg %p1606
    $region34: #{learned_position_embedding.1} parent=5 // pred_check_branch
      %1609 = sbr.rel (%p1607) target = $region36
    $region35: #{learned_position_embedding.1} parent=5 // pred_region
      %s1610 = ssub.s32 %s8, 2
      // Predicated region
      $region37: #{learned_position_embedding.1} parent=35 // pred_check
        %p1611 = pneg %p79
      $region38: #{learned_position_embedding.1} parent=35 // pred_check_branch
        %1613 = sbr.rel (%p1611) target = $region40
      $region39: #{learned_position_embedding.1} parent=35 // pred_region
        %p1614 = scmp.lt.s32.totalorder %s14, 1
        %s1615 = scalar_select %p1614, %s14, 1
        %s1616 = smul.addr %s1615, 256
        %s1617 = smul.addr %s1616, 8
        %s1618 = scalar_lea.vmem %s2, %s1617
      $region40: #{learned_position_embedding.1} parent=35 // pred_fallthru
        _
    $region36: #{learned_position_embedding.1} parent=5 // pred_fallthru
      _
  $region6: #{learned_position_embedding.1} parent=0 // loop_footer
    %s12 = sadd.s32 1, %s8
  $region7: #{learned_position_embedding.1} parent=0 // loop_footer_branch
    %7 = sbr.rel target = $region3
  $region8: #{learned_position_embedding.1} parent=0 // loop_exit
    _

</llo_original>
